<compile_context>
chip_gen: v7x
topology: tpu7x:2x2x1
jax: 0.10.0
libtpu: 0.0.40
codegen_flags: <defaults>
</compile_context>

<pallas_src>
import functools

import jax
import jax.numpy as jnp
import numpy as np
from jax import lax
from jax.experimental import pallas as pl
from jax.experimental.pallas import tpu as pltpu


def _round_up(x, m):
    return (x + m - 1) // m * m


# ---------------------------------------------------------------------------
# Pallas kernels: fused  leaky_relu((X @ W) * scale + shift, 0.01)
# ---------------------------------------------------------------------------
def _matmul_abn_kernel(x_ref, w_ref, scale_ref, shift_ref, o_ref):
    """Single-K-step specialization: no accumulator scratch."""
    y = jnp.dot(x_ref[...], w_ref[...], preferred_element_type=jnp.float32)
    y = y * scale_ref[...] + shift_ref[...]
    o_ref[...] = jnp.where(y >= 0.0, y, 0.01 * y).astype(o_ref.dtype)


def _matmul_abn_acc_kernel(x_ref, w_ref, scale_ref, shift_ref, o_ref, acc_ref):
    """Multi-K-step variant (K > 2048): f32 accumulator, epilogue on last step."""
    k = pl.program_id(2)

    @pl.when(k == 0)
    def _():
        acc_ref[...] = jnp.zeros_like(acc_ref)

    acc_ref[...] += jnp.dot(
        x_ref[...], w_ref[...], preferred_element_type=jnp.float32
    )

    @pl.when(k == pl.num_programs(2) - 1)
    def _():
        y = acc_ref[...] * scale_ref[...] + shift_ref[...]
        o_ref[...] = jnp.where(y >= 0.0, y, 0.01 * y).astype(o_ref.dtype)


def matmul_abn_pallas(x, w, scale, shift, out_dtype=jnp.bfloat16):
    """leaky_relu((x @ w) * scale + shift, 0.01) on the MXU.

    x: (M, K), w: (K, N) -- consumed as bf16 (f32 accumulation).
    scale/shift: (N,) f32 per-output-column affine (conv bias + BN folded).
    Returns (M, N) `out_dtype` (default bf16).
    """
    M, K = x.shape
    Kw, N = w.shape
    assert K == Kw

    x = x.astype(jnp.bfloat16)
    w = w.astype(jnp.bfloat16)

    # ---- tiling -------------------------------------------------------------
    Np = _round_up(N, 128)
    # tn=256 feeds the full v6e/v7x MXU width when N allows it; 128 otherwise
    # (v5e's MXU is 128 wide, no benefit from wider tiles there).
    tn = 256 if (Np >= 256 and Np % 256 == 0) else 128

    if M >= 128:
        tm = min(512, _round_up(M, 128))
        # keep >= 4 parallel (M,N) blocks so each of v7x's 2 TensorCores gets
        # at least 2 blocks (double-buffered pipelining); floor at tm=256.
        while tm > 256 and (_round_up(M, tm) // tm) * (Np // tn) < 4:
            tm //= 2
        Mp = _round_up(M, tm)
    else:
        tm = _round_up(max(M, 8), 8)
        Mp = tm

    single_k = K <= 2048
    if single_k:
        tk, Kp = K, K               # full-K resident; no K padding at all
    else:
        tk = 1024
        Kp = _round_up(K, tk)

    # ---- pad only when actually needed (avoid extra HBM copies) -------------
    if (Mp, Kp) != (M, K):
        x = jnp.pad(x, ((0, Mp - M), (0, Kp - K)))
    if (Kp, Np) != (K, N):
        w = jnp.pad(w, ((0, Kp - K), (0, Np - N)))
    sp = scale.astype(jnp.float32)
    bp = shift.astype(jnp.float32)
    if Np != N:
        sp = jnp.pad(sp, (0, Np - N))
        bp = jnp.pad(bp, (0, Np - N))
    sp = sp.reshape(1, Np)
    bp = bp.reshape(1, Np)

    out_bytes = jnp.dtype(out_dtype).itemsize
    cost = pl.CostEstimate(
        flops=2 * Mp * Kp * Np,
        transcendentals=0,
        bytes_accessed=Mp * Kp * 2 + Kp * Np * 2 + Mp * Np * out_bytes + 2 * Np * 4,
    )
    cparams_kwargs = dict(vmem_limit_bytes=32 * 1024 * 1024)

    if single_k:
        out = pl.pallas_call(
            _matmul_abn_kernel,
            out_shape=jax.ShapeDtypeStruct((Mp, Np), out_dtype),
            grid_spec=pltpu.PrefetchScalarGridSpec(
                num_scalar_prefetch=0,
                grid=(Mp // tm, Np // tn),
                in_specs=[
                    pl.BlockSpec((tm, tk), lambda i, j: (i, 0)),
                    pl.BlockSpec((tk, tn), lambda i, j: (0, j)),
                    pl.BlockSpec((1, tn), lambda i, j: (0, j)),
                    pl.BlockSpec((1, tn), lambda i, j: (0, j)),
                ],
                out_specs=pl.BlockSpec((tm, tn), lambda i, j: (i, j)),
            ),
            compiler_params=pltpu.CompilerParams(
                dimension_semantics=("parallel", "parallel"), **cparams_kwargs
            ),
            cost_estimate=cost,
        )(x, w, sp, bp)
    else:
        out = pl.pallas_call(
            _matmul_abn_acc_kernel,
            out_shape=jax.ShapeDtypeStruct((Mp, Np), out_dtype),
            grid_spec=pltpu.PrefetchScalarGridSpec(
                num_scalar_prefetch=0,
                grid=(Mp // tm, Np // tn, Kp // tk),
                in_specs=[
                    pl.BlockSpec((tm, tk), lambda i, j, kk: (i, kk)),
                    pl.BlockSpec((tk, tn), lambda i, j, kk: (kk, j)),
                    pl.BlockSpec((1, tn), lambda i, j, kk: (0, j)),
                    pl.BlockSpec((1, tn), lambda i, j, kk: (0, j)),
                ],
                out_specs=pl.BlockSpec((tm, tn), lambda i, j, kk: (i, j)),
                scratch_shapes=[pltpu.VMEM((tm, tn), jnp.float32)],
            ),
            compiler_params=pltpu.CompilerParams(
                dimension_semantics=("parallel", "parallel", "arbitrary"),
                **cparams_kwargs,
            ),
            cost_estimate=cost,
        )(x, w, sp, bp)

    if (Mp, Np) != (M, N):
        out = out[:M, :N]
    return out


# ---------------------------------------------------------------------------
# ConvTranspose3d -> BN(eval) -> LeakyReLU forward (sub-pixel decomposition)
# ---------------------------------------------------------------------------
def _window(x, axis, lo, hi, size):
    """Restrict x to global index range [lo, hi] along `axis`, zero-filling
    everything outside [0, size)."""
    pad_lo = max(0, -lo)
    pad_hi = max(0, hi - (size - 1))
    start, stop = max(0, lo), min(size, hi + 1)
    idx = [slice(None)] * x.ndim
    idx[axis] = slice(start, stop)
    xs = x[tuple(idx)]
    if pad_lo or pad_hi:
        widths = [(0, 0)] * x.ndim
        widths[axis] = (pad_lo, pad_hi)
        xs = jnp.pad(xs, widths)
    return xs


def upblock_bn_forward(params, x_ncdhw, *, kernel_size, stride, padding):
    wt = params["weight"]          # (Cin, Cout, k, k, k)  -- PyTorch layout
    bias = params["bias"]          # (Cout,)
    gamma, beta = params["gamma"], params["beta"]
    mean, var, eps = params["running_mean"], params["running_var"], params["eps"]
    Cin, Cout = wt.shape[0], wt.shape[1]
    k, s, p = kernel_size, stride, padding

    # Fold conv bias + eval-mode BN into per-channel scale/shift; LeakyReLU is
    # applied in the Pallas matmul epilogue (single fused pass).
    scale = gamma / jnp.sqrt(var + eps)            # (Cout,)
    shift = beta + scale * (bias - mean)           # (Cout,)

    Nb, _, D, H, W = x_ncdhw.shape
    Do = (D - 1) * s - 2 * p + k
    Ho = (H - 1) * s - 2 * p + k
    Wo = (W - 1) * s - 2 * p + k

    # Channels-last bf16 activations (one small pass over the input).
    x = jnp.transpose(x_ncdhw, (0, 2, 3, 4, 1)).astype(jnp.bfloat16)

    # Sub-pixel / phase decomposition of ConvTranspose3d (per axis):
    #   output o = q*s + r - p  with  r = (o+p) % s,  q = (o+p) // s
    #   out[q, r] = sum_{j in [0,jm)} x[q - j] * W[..., j*s + r]
    # so every phase r is a dense stride-1 matmul over the un-dilated input.
    jm = -(-k // s)                 # ceil(k/s): taps per phase per axis
    q0 = p // s
    Dq = -(-(Do + p) // s) - q0
    Hq = -(-(Ho + p) // s) - q0
    Wq = -(-(Wo + p) // s) - q0

    # Lane-dense folded weight: rows (dd,dh,dw,Cin), cols (rd,rh,rw,Cout),
    # where tap index d maps to kernel offset k_off = (jm-1-d)*s + r (taps with
    # k_off >= k are zero-filled).
    kp = jm * s
    wt_p = jnp.pad(wt, ((0, 0), (0, 0), (0, kp - k), (0, kp - k), (0, kp - k)))
    wt_r = wt_p.reshape(Cin, Cout, jm, s, jm, s, jm, s)
    wt_r = wt_r[:, :, ::-1, :, ::-1, :, ::-1, :]
    w_col = jnp.transpose(wt_r, (2, 4, 6, 0, 3, 5, 7, 1)).reshape(
        jm ** 3 * Cin, s ** 3 * Cout)
    scale_cols = jnp.tile(scale, s ** 3)
    shift_cols = jnp.tile(shift, s ** 3)

    # Input window needed by the q grid (zero-fill outside the input).
    lo = q0 - (jm - 1)
    xw = _window(x, 1, lo, q0 + Dq - 1, D)
    xw = _window(xw, 2, lo, q0 + Hq - 1, H)
    xw = _window(xw, 3, lo, q0 + Wq - 1, W)

    if jm == 1:
        # k <= s: each input voxel feeds its s^3 output block directly; no
        # patch materialization at all.
        patches = xw                                     # (Nb, Dq, Hq, Wq, Cin)
    else:
        cols = []
        for dd in range(jm):
            for dh in range(jm):
                for dw in range(jm):
                    cols.append(xw[:, dd:dd + Dq, dh:dh + Hq, dw:dw + Wq, :])
        patches = jnp.concatenate(cols, axis=-1)   # (Nb, Dq, Hq, Wq, jm^3*Cin)

    M = Nb * Dq * Hq * Wq
    y = matmul_abn_pallas(patches.reshape(M, jm ** 3 * Cin), w_col,
                          scale_cols, shift_cols)        # (M, s^3*Cout) bf16

    # Interleave phases back into the spatial grid and crop to the true output.
    y = y.reshape(Nb, Dq, Hq, Wq, s, s, s, Cout)
    y = jnp.transpose(y, (0, 1, 4, 2, 5, 3, 6, 7)).reshape(
        Nb, Dq * s, Hq * s, Wq * s, Cout)
    c = p - q0 * s                                       # = p % s
    y = y[:, c:c + Do, c:c + Ho, c:c + Wo, :]

    return jnp.transpose(y, (0, 4, 1, 2, 3)).astype(jnp.float32)   # NCDHW f32


# ---------------------------------------------------------------------------
# Pure-JAX reference (same math, XLA conv) for in-script correctness check
# ---------------------------------------------------------------------------
def upblock_bn_reference(params, x_ncdhw, *, kernel_size, stride, padding):
    wt = params["weight"]
    bias = params["bias"]
    gamma, beta = params["gamma"], params["beta"]
    mean, var, eps = params["running_mean"], params["running_var"], params["eps"]
    k, s, p = kernel_size, stride, padding

    w_flip = wt[:, :, ::-1, ::-1, ::-1]
    rhs = jnp.transpose(w_flip, (1, 0, 2, 3, 4))   # (O, I, kd, kh, kw)
    pad = k - 1 - p
    y = lax.conv_general_dilated(
        x_ncdhw.astype(jnp.float32), rhs,
        window_strides=(1, 1, 1),
        padding=[(pad, pad)] * 3,
        lhs_dilation=(s, s, s),
        dimension_numbers=("NCDHW", "OIDHW", "NCDHW"),
    )
    y = y + bias.reshape(1, -1, 1, 1, 1)
    scale = gamma / jnp.sqrt(var + eps)
    shift = beta - mean * scale
    y = y * scale.reshape(1, -1, 1, 1, 1) + shift.reshape(1, -1, 1, 1, 1)
    return jnp.where(y >= 0.0, y, 0.01 * y)


# ---------------------------------------------------------------------------
# Deterministic synthetic parameters
# ---------------------------------------------------------------------------
def init_params(key, in_planes, out_planes, k, eps=1e-5):
    kw, kb, kg, kbt, km, kv = jax.random.split(key, 6)
    fan = in_planes * k ** 3
    wt = jax.random.normal(kw, (in_planes, out_planes, k, k, k),
                           jnp.float32) / np.sqrt(fan)
    bias = 0.05 * jax.random.normal(kb, (out_planes,), jnp.float32)
    gamma = 1.0 + 0.1 * jax.random.normal(kg, (out_planes,), jnp.float32)
    beta = 0.1 * jax.random.normal(kbt, (out_planes,), jnp.float32)
    mean = 0.1 * jax.random.normal(km, (out_planes,), jnp.float32)
    var = 1.0 + 0.1 * jax.random.uniform(kv, (out_planes,), jnp.float32)
    return dict(weight=wt, bias=bias, gamma=gamma, beta=beta,
                running_mean=mean, running_var=var, eps=eps)


# ---------------------------------------------------------------------------
# Main
# ---------------------------------------------------------------------------
if __name__ == "__main__":
    key = jax.random.PRNGKey(0)
    pkey, xkey = jax.random.split(key)

    in_planes, out_planes = 32, 16
    x = jax.random.normal(xkey, (2, in_planes, 8, 8, 8), jnp.float32)

    configs = [
        dict(kernel_size=2, stride=2, padding=0),   # non-overlapping (k == s)
        dict(kernel_size=3, stride=2, padding=1),   # overlapping taps + crop
    ]

    for cfg in configs:
        params = init_params(pkey, in_planes, out_planes, cfg["kernel_size"])
        fwd = jax.jit(functools.partial(upblock_bn_forward, **cfg))
        out = jax.block_until_ready(fwd(params, x))

        D_out = (x.shape[2] - 1) * cfg["stride"] - 2 * cfg["padding"] + cfg["kernel_size"]
        assert out.shape == (2, out_planes, D_out, D_out, D_out), out.shape
        assert bool(jnp.all(jnp.isfinite(out)))

        ref = upblock_bn_reference(params, x, **cfg)
        max_err = float(jnp.max(jnp.abs(out - ref)))
        # bf16 matmul operands + bf16 writeback vs f32 reference.
        tol = 5e-2 * max(1.0, float(jnp.max(jnp.abs(ref))))
        assert max_err < tol, f"max abs error {max_err} (tol {tol}) for cfg {cfg}"

    # Exercise the multi-K-step accumulator kernel path (K > 2048) directly.
    a = jax.random.normal(jax.random.PRNGKey(1), (256, 2560), jnp.float32)
    b = jax.random.normal(jax.random.PRNGKey(2), (2560, 128), jnp.float32) / 50.0
    sc = jnp.ones((128,), jnp.float32)
    sh = jnp.zeros((128,), jnp.float32)
    got = jax.block_until_ready(matmul_abn_pallas(a, b, sc, sh)).astype(jnp.float32)
    want = a @ b
    want = jnp.where(want >= 0.0, want, 0.01 * want)
    acc_err = float(jnp.max(jnp.abs(got - want)))
    assert acc_err < 5e-2 * max(1.0, float(jnp.max(jnp.abs(want)))), acc_err

    print("KERNEL_OK")
</pallas_src>

<mosaic_0001>
module attributes {stable_mosaic.version = 11 : i64} {
  func.func @_matmul_abn_kernel(%arg0: i32, %arg1: i32, %arg2: memref<256x32xbf16, #tpu.memory_space<vmem>>, %arg3: memref<32x128xbf16, #tpu.memory_space<vmem>>, %arg4: memref<1x128xf32, #tpu.memory_space<vmem>>, %arg5: memref<1x128xf32, #tpu.memory_space<vmem>>, %arg6: memref<256x128xbf16, #tpu.memory_space<vmem>>) attributes {dimension_semantics = [#tpu.dimension_semantics<parallel>, #tpu.dimension_semantics<parallel>], iteration_bounds = array<i64: 4, 1>, scalar_prefetch = 0 : i64, scratch_operands = 0 : i64, tpu.core_type = #tpu.core_type<tc>, window_params = [{transform_indices = @transform_0, window_bounds = array<i64: 256, 32>}, {transform_indices = @transform_1, window_bounds = array<i64: 32, 128>}, {transform_indices = @transform_2, window_bounds = array<i64: 1, 128>}, {transform_indices = @transform_3, window_bounds = array<i64: 1, 128>}, {transform_indices = @transform_4, window_bounds = array<i64: 256, 128>}]} {
    %c0 = arith.constant 0 : index
    %c0_0 = arith.constant 0 : index
    %0 = vector.load %arg2[%c0, %c0_0] : memref<256x32xbf16, #tpu.memory_space<vmem>>, vector<256x32xbf16>
    %c0_1 = arith.constant 0 : index
    %c0_2 = arith.constant 0 : index
    %1 = vector.load %arg3[%c0_1, %c0_2] : memref<32x128xbf16, #tpu.memory_space<vmem>>, vector<32x128xbf16>
    %cst = arith.constant dense<0.000000e+00> : vector<256x128xf32>
    %2 = tpu.matmul %0, %1, %cst {dimension_numbers = #tpu.dot_dimension_numbers<[1], [0], [0], [1], [0, 0, 1, 1], [], []>} : vector<256x32xbf16>, vector<32x128xbf16>, vector<256x128xf32> -> vector<256x128xf32>
    %c0_3 = arith.constant 0 : index
    %c0_4 = arith.constant 0 : index
    %3 = vector.load %arg4[%c0_3, %c0_4] : memref<1x128xf32, #tpu.memory_space<vmem>>, vector<1x128xf32>
    %4 = vector.broadcast %3 : vector<1x128xf32> to vector<256x128xf32>
    %5 = arith.mulf %2, %4 : vector<256x128xf32>
    %c0_5 = arith.constant 0 : index
    %c0_6 = arith.constant 0 : index
    %6 = vector.load %arg5[%c0_5, %c0_6] : memref<1x128xf32, #tpu.memory_space<vmem>>, vector<1x128xf32>
    %7 = vector.broadcast %6 : vector<1x128xf32> to vector<256x128xf32>
    %8 = arith.addf %5, %7 : vector<256x128xf32>
    %cst_7 = arith.constant 0.000000e+00 : f32
    %9 = vector.broadcast %cst_7 : f32 to vector<256x128xf32>
    %10 = arith.cmpf oge, %8, %9 : vector<256x128xf32>
    %cst_8 = arith.constant 0.00999999977 : f32
    %11 = vector.broadcast %cst_8 : f32 to vector<256x128xf32>
    %12 = arith.mulf %11, %8 : vector<256x128xf32>
    %13 = arith.select %10, %8, %12 : vector<256x128xi1>, vector<256x128xf32>
    %14 = arith.truncf %13 : vector<256x128xf32> to vector<256x128xbf16>
    %c0_9 = arith.constant 0 : index
    %c0_10 = arith.constant 0 : index
    %15 = vector.load %arg6[%c0_9, %c0_10] : memref<256x128xbf16, #tpu.memory_space<vmem>>, vector<256x128xbf16>
    tpu.vector_store %arg6[%c0_9, %c0_10], %14 {strides = array<i32>} : memref<256x128xbf16, #tpu.memory_space<vmem>>, vector<256x128xbf16>,
    return
  }
  func.func @transform_0(%arg0: i32, %arg1: i32) -> (i32, i32) {
    %c0_i32 = arith.constant 0 : i32
    %c0_i32_0 = arith.constant 0 : i32
    return %arg0, %c0_i32 : i32, i32
  }
  func.func @transform_1(%arg0: i32, %arg1: i32) -> (i32, i32) {
    %c0_i32 = arith.constant 0 : i32
    %c0_i32_0 = arith.constant 0 : i32
    return %c0_i32, %arg1 : i32, i32
  }
  func.func @transform_2(%arg0: i32, %arg1: i32) -> (i32, i32) {
    %c0_i32 = arith.constant 0 : i32
    %c0_i32_0 = arith.constant 0 : i32
    return %c0_i32, %arg1 : i32, i32
  }
  func.func @transform_3(%arg0: i32, %arg1: i32) -> (i32, i32) {
    %c0_i32 = arith.constant 0 : i32
    %c0_i32_0 = arith.constant 0 : i32
    return %c0_i32, %arg1 : i32, i32
  }
  func.func @transform_4(%arg0: i32, %arg1: i32) -> (i32, i32) {
    %c0_i32 = arith.constant 0 : i32
    return %arg0, %arg1 : i32, i32
  }
}

</mosaic_0001>

<llo_original>
// kernel: tile.17
$region0: #{tile.17}
  #allocation0 [shape = 's32[1]{0}', space=sflag, size = 0x4, scoped, tag = 'scoped memory for tile.17']
  %s0 = inlined_call_operand.vmem [shape: f32[16], index: 0, kind: input, shape index: {}]
  %s1 = inlined_call_operand.vmem [shape: f32[8,16], index: 1, kind: output, shape index: {}]
  // Predicated region
  $region2: #{tile.17} parent=0 // pred_check
    _
  $region3: #{tile.17} parent=0 // pred_check_branch
    %3 = sbr.rel (0) target = $region5
  $region4: #{tile.17} parent=0 // pred_region
    _
  $region5: #{tile.17} parent=0 // pred_fallthru
    _
  %v4 = vld [vmem:[%s0] ss:$0 sm:$0xff]
  %5 = vst [vmem:[%s1] sm:$0xff] %v4

// kernel: tile.19
$region0: #{tile.19}
  %s0 = inlined_call_operand.vmem [shape: f32[8,16], index: 0, kind: input, shape index: {}]
  %s1 = inlined_call_operand.vmem [shape: f32[1,128], index: 1, kind: output, shape index: {}]
  $region1: #{tile.19} parent=0
    #allocation0 [shape = 'u8[4096]{0}', space=vmem, size = 0x1000, scoped, tag = 'scoped mem for output reshape']
    %v2 = vld [vmem:[%s0] sm:$0x1]
    %vm3 = vcmask 130048
    %4 = vst.msk [vmem:[#allocation0] sm:$0x1] %vm3, %v2
    %s5 = scalar_lea.vmem %s0, 7
    %v6 = vld [vmem:[%s5] sm:$0x1]
    %7 = vrot.lane.b32.xlu0 %v6, 112
    %v8 = vpop.permute.xlu0 %7
    %vm9 = vcmask 1048448
    %10 = vst.msk [vmem:[#allocation0] sm:$0x1] %vm9, %v8
    %s11 = scalar_lea.vmem %s0, 6
    %v12 = vld [vmem:[%s11] sm:$0x1]
    %13 = vrot.lane.b32.xlu0 %v12, 96
    %v14 = vpop.permute.xlu0 %13
    %vm15 = vcmask 917248
    %16 = vst.msk [vmem:[#allocation0] sm:$0x1] %vm15, %v14
    %s17 = scalar_lea.vmem %s0, 5
    %v18 = vld [vmem:[%s17] sm:$0x1]
    %19 = vrot.lane.b32.xlu0 %v18, 80
    %v20 = vpop.permute.xlu0 %19
    %vm21 = vcmask 786048
    %22 = vst.msk [vmem:[#allocation0] sm:$0x1] %vm21, %v20
    %s23 = scalar_lea.vmem %s0, 4
    %v24 = vld [vmem:[%s23] sm:$0x1]
    %25 = vrot.lane.b32.xlu0 %v24, 64
    %v26 = vpop.permute.xlu0 %25
    %vm27 = vcmask 654848
    %28 = vst.msk [vmem:[#allocation0] sm:$0x1] %vm27, %v26
    %s29 = scalar_lea.vmem %s0, 3
    %v30 = vld [vmem:[%s29] sm:$0x1]
    %31 = vrot.lane.b32.xlu0 %v30, 48
    %v32 = vpop.permute.xlu0 %31
    %vm33 = vcmask 523648
    %34 = vst.msk [vmem:[#allocation0] sm:$0x1] %vm33, %v32
    %s35 = scalar_lea.vmem %s0, 2
    %v36 = vld [vmem:[%s35] sm:$0x1]
    %37 = vrot.lane.b32.xlu0 %v36, 32
    %v38 = vpop.permute.xlu0 %37
    %vm39 = vcmask 392448
    %40 = vst.msk [vmem:[#allocation0] sm:$0x1] %vm39, %v38
    %s41 = scalar_lea.vmem %s0, 1
    %v42 = vld [vmem:[%s41] sm:$0x1]
    %43 = vrot.lane.b32.xlu0 %v42, 16
    %v44 = vpop.permute.xlu0 %43
    %vm45 = vcmask 261248
    %46 = vst.msk [vmem:[#allocation0] sm:$0x1] %vm45, %v44
    %s48 = sshllo.u32 0, 1
    %v50 = vld [vmem:[#allocation0] sm:%s48]
    %s51 = sshllo.u32 0, 1
    %52 = vst [vmem:[%s1] sm:%s51] %v50

// kernel: upblock_bn_forward.1
$region0: #{upblock_bn_forward.1}
  #allocation0 [shape = 'u32[]', space=smem, size = 0x4, offset = 0x4, fixed_abs, tag = 'smem constant byte address 0x4 - core index']
  #allocation1 [shape = 'u32[144,128]{1,0:T(1,128)}', space=vmem, size = 0x12000, scoped, tag = 'internal scratch']
  %s0 = inlined_call_operand.vmem [shape: bf16[1024,32], index: 0, kind: input, shape index: {}]
  %s1 = inlined_call_operand.vmem [shape: bf16[32,128], index: 1, kind: input, shape index: {}]
  %s2 = inlined_call_operand.vmem [shape: f32[1,128], index: 2, kind: input, shape index: {}]
  %s3 = inlined_call_operand.vmem [shape: f32[1,128], index: 3, kind: input, shape index: {}]
  %s4 = inlined_call_operand.vmem [shape: bf16[1024,128], index: 4, kind: output, shape index: {}]
  %s5 = sld [smem:[#allocation0]]
  $region49: #{upblock_bn_forward.1} parent=0
    _
  %s7 = ssub.s32 1, %s5
  %s8 = scalar_select 0, %s7, %s5
  loop: start=0, step=1, limit=6
  $region2: #{upblock_bn_forward.1} parent=0 // loop_pre_header
    _
  $region3: #{upblock_bn_forward.1} parent=0 // loop_header
    %s10 = sphi 0, %s14
    %p11 = scmp.ge.s32.totalorder %s10, 6
    %s17 = sphi 0, %s29
    %s18 = sphi 0, %s25
    %s19 = sphi 0, %s17
    %s20 = sphi 0, %s18
    %s21 = sphi 0, %s19
    %s22 = sphi 0, %s20
    %s32 = sphi 0, %s34
    %s35 = sphi 0, %s32
    %s36 = sphi 0, %s35
    %s52 = sphi 0, %s36
    %s58 = sphi 0, %s60
    %s61 = sphi 0, %s58
    %s62 = sphi 0, %s61
    %s78 = sphi 0, %s62
    %s84 = sphi 0, %s86
    %s87 = sphi 0, %s84
    %s88 = sphi 0, %s87
    %s104 = sphi 0, %s88
    %s110 = sphi 0, %s112
    %s113 = sphi 0, %s110
    %s114 = sphi 0, %s113
    %s130 = sphi 0, %s114
    %s138 = sphi 0, %s140
    %s141 = sphi 0, %s138
    %s142 = sphi 0, %s141
    %s158 = sphi 0, %s142
  $region4: #{upblock_bn_forward.1} parent=0 // loop_header_branch
    %13 = sbr.rel (%p11) target = $region8
  $region5: #{upblock_bn_forward.1} parent=0 // loop_body
    %s15 = ssub.s32 %s10, 1
    %s16 = ssub.s32 %s10, 2
    %s23 = sadd.s32 1, %s18
    %p24 = scmp.ge.s32.totalorder %s23, 1
    %s25 = scalar_select %p24, 0, %s23
    %s26 = sadd.s32 1, %s17
    %s27 = scalar_select %p24, %s26, %s17
    %p28 = scmp.ge.s32.totalorder %s27, 4
    %s29 = scalar_select %p28, 0, %s27
    %s30 = ssub.s32 %s17, %s29
    %p31 = scmp.eq.s32.totalorder %s30, 0
    %s33 = sadd.s32 %s32, 1
    %s34 = scalar_select %p31, %s32, %s33
    %p37 = pneg %p31
    %p38 = scmp.eq.s32.totalorder %s10, 3
    %p39 = por %p37, %p38
    %p40 = scmp.ne.s32.totalorder %s32, %s35
    %p41 = scmp.eq.s32.totalorder %s10, 0
    %p42 = por %p40, %p41
    %p43 = scmp.ne.s32.totalorder %s32, %s35
    %p44 = scmp.eq.s32.totalorder %s15, 3
    %p45 = por %p43, %p44
    %p46 = scmp.ne.s32.totalorder %s35, %s36
    %p47 = scmp.eq.s32.totalorder %s15, 0
    %p48 = por %p46, %p47
    %p49 = scmp.ne.s32.totalorder %s35, %s36
    %p50 = scmp.eq.s32.totalorder %s16, 3
    %p51 = por %p49, %p50
    %p53 = scmp.ne.s32.totalorder %s36, %s52
    %p54 = scmp.eq.s32.totalorder %s16, 0
    %p55 = por %p53, %p54
    %s56 = ssub.s32 %s18, %s25
    %p57 = scmp.eq.s32.totalorder %s56, 0
    %s59 = sadd.s32 %s58, 1
    %s60 = scalar_select %p57, %s58, %s59
    %p63 = pneg %p57
    %p64 = scmp.eq.s32.totalorder %s10, 3
    %p65 = por %p63, %p64
    %p66 = scmp.ne.s32.totalorder %s58, %s61
    %p67 = scmp.eq.s32.totalorder %s10, 0
    %p68 = por %p66, %p67
    %p69 = scmp.ne.s32.totalorder %s58, %s61
    %p70 = scmp.eq.s32.totalorder %s15, 3
    %p71 = por %p69, %p70
    %p72 = scmp.ne.s32.totalorder %s61, %s62
    %p73 = scmp.eq.s32.totalorder %s15, 0
    %p74 = por %p72, %p73
    %p75 = scmp.ne.s32.totalorder %s61, %s62
    %p76 = scmp.eq.s32.totalorder %s16, 3
    %p77 = por %p75, %p76
    %p79 = scmp.ne.s32.totalorder %s62, %s78
    %p80 = scmp.eq.s32.totalorder %s16, 0
    %p81 = por %p79, %p80
    %s82 = ssub.s32 %s18, %s25
    %p83 = scmp.eq.s32.totalorder %s82, 0
    %s85 = sadd.s32 %s84, 1
    %s86 = scalar_select %p83, %s84, %s85
    %p89 = pneg %p83
    %p90 = scmp.eq.s32.totalorder %s10, 3
    %p91 = por %p89, %p90
    %p92 = scmp.ne.s32.totalorder %s84, %s87
    %p93 = scmp.eq.s32.totalorder %s10, 0
    %p94 = por %p92, %p93
    %p95 = scmp.ne.s32.totalorder %s84, %s87
    %p96 = scmp.eq.s32.totalorder %s15, 3
    %p97 = por %p95, %p96
    %p98 = scmp.ne.s32.totalorder %s87, %s88
    %p99 = scmp.eq.s32.totalorder %s15, 0
    %p100 = por %p98, %p99
    %p101 = scmp.ne.s32.totalorder %s87, %s88
    %p102 = scmp.eq.s32.totalorder %s16, 3
    %p103 = por %p101, %p102
    %p105 = scmp.ne.s32.totalorder %s88, %s104
    %p106 = scmp.eq.s32.totalorder %s16, 0
    %p107 = por %p105, %p106
    %s108 = ssub.s32 %s18, %s25
    %p109 = scmp.eq.s32.totalorder %s108, 0
    %s111 = sadd.s32 %s110, 1
    %s112 = scalar_select %p109, %s110, %s111
    %p115 = pneg %p109
    %p116 = scmp.eq.s32.totalorder %s10, 3
    %p117 = por %p115, %p116
    %p118 = scmp.ne.s32.totalorder %s110, %s113
    %p119 = scmp.eq.s32.totalorder %s10, 0
    %p120 = por %p118, %p119
    %p121 = scmp.ne.s32.totalorder %s110, %s113
    %p122 = scmp.eq.s32.totalorder %s15, 3
    %p123 = por %p121, %p122
    %p124 = scmp.ne.s32.totalorder %s113, %s114
    %p125 = scmp.eq.s32.totalorder %s15, 0
    %p126 = por %p124, %p125
    %p127 = scmp.ne.s32.totalorder %s113, %s114
    %p128 = scmp.eq.s32.totalorder %s16, 3
    %p129 = por %p127, %p128
    %p131 = scmp.ne.s32.totalorder %s114, %s130
    %p132 = scmp.eq.s32.totalorder %s16, 0
    %p133 = por %p131, %p132
    %s134 = ssub.s32 %s17, %s29
    %s135 = ssub.s32 %s18, %s25
    %s136 = sor.u32 %s134, %s135
    %p137 = scmp.eq.s32.totalorder %s136, 0
    %s139 = sadd.s32 %s138, 1
    %s140 = scalar_select %p137, %s138, %s139
    %p143 = pneg %p137
    %p144 = scmp.eq.s32.totalorder %s10, 3
    %p145 = por %p143, %p144
    %p146 = scmp.ne.s32.totalorder %s138, %s141
    %p147 = scmp.eq.s32.totalorder %s10, 0
    %p148 = por %p146, %p147
    %p149 = scmp.ne.s32.totalorder %s138, %s141
    %p150 = scmp.eq.s32.totalorder %s15, 3
    %p151 = por %p149, %p150
    %p152 = scmp.ne.s32.totalorder %s141, %s142
    %p153 = scmp.eq.s32.totalorder %s15, 0
    %p154 = por %p152, %p153
    %p155 = scmp.ne.s32.totalorder %s141, %s142
    %p156 = scmp.eq.s32.totalorder %s16, 3
    %p157 = por %p155, %p156
    %p159 = scmp.ne.s32.totalorder %s142, %s158
    %p160 = scmp.eq.s32.totalorder %s16, 0
    %p161 = por %p159, %p160
    %p162 = scmp.le.s32.totalorder 1, %s10
    %p163 = scmp.lt.s32.totalorder %s10, 5
    %p164 = pnand %p162, %p163
    %p165 = pneg %p164
    // Predicated region
    $region9: #{upblock_bn_forward.1} parent=5 // pred_check
      _
    $region10: #{upblock_bn_forward.1} parent=5 // pred_check_branch
      %167 = sbr.rel (%p164) target = $region12
    $region11: #{upblock_bn_forward.1} parent=5 // pred_region
      %s168 = ssub.s32 %s10, 1
      // Predicated region
      $region13: #{upblock_bn_forward.1} parent=11 // pred_check
        %p169 = pneg %p74
      $region14: #{upblock_bn_forward.1} parent=11 // pred_check_branch
        %171 = sbr.rel (%p169) target = $region16
      $region15: #{upblock_bn_forward.1} parent=11 // pred_region
        %p172 = scmp.lt.s32.totalorder %s20, 0
        %s173 = scalar_select %p172, %s20, 0
        %s174 = smul.addr %s173, 4
        %s175 = scalar_lea.vmem %s1, %s174
      $region16: #{upblock_bn_forward.1} parent=11 // pred_fallthru
        _
      // Predicated region
      $region17: #{upblock_bn_forward.1} parent=11 // pred_check
        %p176 = pneg %p100
      $region18: #{upblock_bn_forward.1} parent=11 // pred_check_branch
        %178 = sbr.rel (%p176) target = $region20
      $region19: #{upblock_bn_forward.1} parent=11 // pred_region
        %p179 = scmp.lt.s32.totalorder %s20, 0
        %s180 = scalar_select %p179, %s20, 0
        %s181 = scalar_lea.vmem %s2, %s180
      $region20: #{upblock_bn_forward.1} parent=11 // pred_fallthru
        _
      // Predicated region
      $region21: #{upblock_bn_forward.1} parent=11 // pred_check
        %p182 = pneg %p126
      $region22: #{upblock_bn_forward.1} parent=11 // pred_check_branch
        %184 = sbr.rel (%p182) target = $region24
      $region23: #{upblock_bn_forward.1} parent=11 // pred_region
        %p185 = scmp.lt.s32.totalorder %s20, 0
        %s186 = scalar_select %p185, %s20, 0
        %s187 = scalar_lea.vmem %s3, %s186
      $region24: #{upblock_bn_forward.1} parent=11 // pred_fallthru
        _
    $region12: #{upblock_bn_forward.1} parent=5 // pred_fallthru
      _
    %p188 = scmp.lt.s32.totalorder %s10, 4
    // Predicated region
    $region25: #{upblock_bn_forward.1} parent=5 // pred_check
      %p189 = pneg %p188
    $region26: #{upblock_bn_forward.1} parent=5 // pred_check_branch
      %191 = sbr.rel (%p189) target = $region28
    $region27: #{upblock_bn_forward.1} parent=5 // pred_region
      // Predicated region
      $region29: #{upblock_bn_forward.1} parent=27 // pred_check
        %p192 = pneg %p42
      $region30: #{upblock_bn_forward.1} parent=27 // pred_check_branch
        %194 = sbr.rel (%p192) target = $region32
      $region31: #{upblock_bn_forward.1} parent=27 // pred_region
        %s195 = smul.u32 32, %s17
        %p196 = scmp.lt.s32.totalorder %s195, 127
        %s197 = scalar_select %p196, %s195, 127
        %s198 = smul.addr %s197, 4
        %s199 = scalar_lea.vmem %s0, %s198
        %s200 = smul.u32 32, %s17
      $region32: #{upblock_bn_forward.1} parent=27 // pred_fallthru
        _
    $region28: #{upblock_bn_forward.1} parent=5 // pred_fallthru
      _
    %p201 = scmp.le.s32.totalorder 1, %s10
    %p202 = scmp.lt.s32.totalorder %s10, 5
    %p203 = pnand %p201, %p202
    %p204 = pneg %p203
    // Predicated region
    $region33: #{upblock_bn_forward.1} parent=5 // pred_check
      _
    $region34: #{upblock_bn_forward.1} parent=5 // pred_check_branch
      %206 = sbr.rel (%p203) target = $region36
    $region35: #{upblock_bn_forward.1} parent=5 // pred_region
      %s207 = ssub.s32 %s10, 1
      %s208 = smul.u32 32, %s19
      %p209 = scmp.lt.s32.totalorder %s208, 127
      %s210 = scalar_select %p209, %s208, 127
      %s211 = smul.addr %s210, 4
      %s212 = scalar_lea.vmem %s0, %s211
      %p213 = pneg %p48
      %p214 = pneg %p45
      %p215 = scmp.lt.s32.totalorder %s20, 0
      %s216 = scalar_select %p215, %s20, 0
      %s217 = smul.addr %s216, 4
      %s218 = scalar_lea.vmem %s1, %s217
      %p219 = pneg %p74
      %p220 = pneg %p71
      %p221 = scmp.lt.s32.totalorder %s20, 0
      %s222 = scalar_select %p221, %s20, 0
      %s223 = scalar_lea.vmem %s2, %s222
      %p224 = pneg %p100
      %p225 = pneg %p97
      %p226 = scmp.lt.s32.totalorder %s20, 0
      %s227 = scalar_select %p226, %s20, 0
      %s228 = scalar_lea.vmem %s3, %s227
      %p229 = pneg %p126
      %p230 = pneg %p123
      %p231 = pneg %p154
      %p232 = pneg %p151
      %s233 = smul.u32 32, %s19
      %p234 = scmp.lt.s32.totalorder %s233, 127
      %s235 = scalar_select %p234, %s233, 127
      %p236 = scmp.lt.s32.totalorder %s20, 0
      %s237 = scalar_select %p236, %s20, 0
      %s238 = sadd.s32 %s237, %s235
      %s239 = smul.addr %s238, 4
      %s240 = scalar_lea.vmem %s4, %s239
      %s241 = smul.u32 32, %s19
      %p242 = scmp.lt.s32.totalorder %s241, 127
      %s243 = scalar_select %p242, %s241, 127
      %s244 = smul.addr %s243, 4
      %s245 = scalar_lea.vmem %s0, %s244
      %s246 = smul.u32 32, %s19
      %p247 = scmp.lt.s32.totalorder %s20, 0
      %s248 = scalar_select %p247, %s20, 0
      %s249 = smul.addr %s248, 4
      %s250 = scalar_lea.vmem %s1, %s249
      %p251 = scmp.lt.s32.totalorder %s20, 0
      %s252 = scalar_select %p251, %s20, 0
      %s253 = scalar_lea.vmem %s2, %s252
      %p254 = scmp.lt.s32.totalorder %s20, 0
      %s255 = scalar_select %p254, %s20, 0
      %s256 = scalar_lea.vmem %s3, %s255
      %s257 = smul.u32 32, %s19
      %p258 = scmp.lt.s32.totalorder %s257, 127
      %s259 = scalar_select %p258, %s257, 127
      %p260 = scmp.lt.s32.totalorder %s20, 0
      %s261 = scalar_select %p260, %s20, 0
      %s262 = sadd.s32 %s261, %s259
      %s263 = smul.addr %s262, 4
      %s264 = scalar_lea.vmem %s4, %s263
      %s265 = smul.u32 32, %s19
      %v267 = vld [vmem:[%s245] sm:$0xf]
      %v268 = vld [vmem:[%s245 + $0x4] sm:$0xf]
      %v269 = vld [vmem:[%s245 + $0x8] sm:$0xf]
      %v270 = vld [vmem:[%s245 + $0xc] sm:$0xf]
      %v271 = vld [vmem:[%s245 + $0x10] sm:$0xf]
      %v272 = vld [vmem:[%s245 + $0x14] sm:$0xf]
      %v273 = vld [vmem:[%s245 + $0x18] sm:$0xf]
      %v274 = vld [vmem:[%s245 + $0x1c] sm:$0xf]
      %v275 = vld [vmem:[%s245 + $0x20] sm:$0xf]
      %v276 = vld [vmem:[%s245 + $0x24] sm:$0xf]
      %v277 = vld [vmem:[%s245 + $0x28] sm:$0xf]
      %v278 = vld [vmem:[%s245 + $0x2c] sm:$0xf]
      %v279 = vld [vmem:[%s245 + $0x30] sm:$0xf]
      %v280 = vld [vmem:[%s245 + $0x34] sm:$0xf]
      %v281 = vld [vmem:[%s245 + $0x38] sm:$0xf]
      %v282 = vld [vmem:[%s245 + $0x3c] sm:$0xf]
      %v283 = vld [vmem:[%s245 + $0x40] sm:$0xf]
      %v284 = vld [vmem:[%s245 + $0x44] sm:$0xf]
      %v285 = vld [vmem:[%s245 + $0x48] sm:$0xf]
      %v286 = vld [vmem:[%s245 + $0x4c] sm:$0xf]
      %v287 = vld [vmem:[%s245 + $0x50] sm:$0xf]
      %v288 = vld [vmem:[%s245 + $0x54] sm:$0xf]
      %v289 = vld [vmem:[%s245 + $0x58] sm:$0xf]
      %v290 = vld [vmem:[%s245 + $0x5c] sm:$0xf]
      %v291 = vld [vmem:[%s245 + $0x60] sm:$0xf]
      %v292 = vld [vmem:[%s245 + $0x64] sm:$0xf]
      %v293 = vld [vmem:[%s245 + $0x68] sm:$0xf]
      %v294 = vld [vmem:[%s245 + $0x6c] sm:$0xf]
      %v295 = vld [vmem:[%s245 + $0x70] sm:$0xf]
      %v296 = vld [vmem:[%s245 + $0x74] sm:$0xf]
      %v297 = vld [vmem:[%s245 + $0x78] sm:$0xf]
      %v298 = vld [vmem:[%s245 + $0x7c] sm:$0xf]
      %v299 = vld [vmem:[%s250] sm:$0xf]
      %v300 = vld [vmem:[%s250 + $0x4] sm:$0xf]
      %v301 = vld [vmem:[%s250 + $0x8] sm:$0xf]
      %v302 = vld [vmem:[%s250 + $0xc] sm:$0xf]
      %v335 = vunpack.c.l.b16 %v267
      %v336 = vunpack.c.l.b16 %v268
      %v337 = vunpack.c.l.b16 %v269
      %v338 = vunpack.c.l.b16 %v270
      %v339 = vunpack.c.l.b16 %v271
      %v340 = vunpack.c.l.b16 %v272
      %v341 = vunpack.c.l.b16 %v273
      %v342 = vunpack.c.l.b16 %v274
      %v343 = vunpack.c.l.b16 %v275
      %v344 = vunpack.c.l.b16 %v276
      %v345 = vunpack.c.l.b16 %v277
      %v346 = vunpack.c.l.b16 %v278
      %v347 = vunpack.c.l.b16 %v279
      %v348 = vunpack.c.l.b16 %v280
      %v349 = vunpack.c.l.b16 %v281
      %v350 = vunpack.c.l.b16 %v282
      %v351 = vunpack.c.l.b16 %v283
      %v352 = vunpack.c.l.b16 %v284
      %v353 = vunpack.c.l.b16 %v285
      %v354 = vunpack.c.l.b16 %v286
      %v355 = vunpack.c.l.b16 %v287
      %v356 = vunpack.c.l.b16 %v288
      %v357 = vunpack.c.l.b16 %v289
      %v358 = vunpack.c.l.b16 %v290
      %v359 = vunpack.c.l.b16 %v291
      %v360 = vunpack.c.l.b16 %v292
      %v361 = vunpack.c.l.b16 %v293
      %v362 = vunpack.c.l.b16 %v294
      %v363 = vunpack.c.l.b16 %v295
      %v364 = vunpack.c.l.b16 %v296
      %v365 = vunpack.c.l.b16 %v297
      %v366 = vunpack.c.l.b16 %v298
      %v367 = vpack.c.b16 %v336, %v335
      %v368 = vpack.c.b16 %v338, %v337
      %v369 = vpack.c.b16 %v340, %v339
      %v370 = vpack.c.b16 %v342, %v341
      %v371 = vpack.c.b16 %v344, %v343
      %v372 = vpack.c.b16 %v346, %v345
      %v373 = vpack.c.b16 %v348, %v347
      %v374 = vpack.c.b16 %v350, %v349
      %v375 = vpack.c.b16 %v352, %v351
      %v376 = vpack.c.b16 %v354, %v353
      %v377 = vpack.c.b16 %v356, %v355
      %v378 = vpack.c.b16 %v358, %v357
      %v379 = vpack.c.b16 %v360, %v359
      %v380 = vpack.c.b16 %v362, %v361
      %v381 = vpack.c.b16 %v364, %v363
      %v382 = vpack.c.b16 %v366, %v365
      %v387 = vunpack.c.l.b16 %v299
      %v388 = vunpack.c.l.b16 %v300
      %v389 = vunpack.c.l.b16 %v301
      %v390 = vunpack.c.l.b16 %v302
      %v391 = vpack.c.b16 %v388, %v387
      %v392 = vpack.c.b16 %v390, %v389
      %vm395 = vcmask 261120
      %v397 = vsel %vm395, %v367, 0
      %v400 = vsel %vm395, %v368, 0
      %v403 = vsel %vm395, %v369, 0
      %v406 = vsel %vm395, %v370, 0
      %v409 = vsel %vm395, %v371, 0
      %v412 = vsel %vm395, %v372, 0
      %v415 = vsel %vm395, %v373, 0
      %v418 = vsel %vm395, %v374, 0
      %v421 = vsel %vm395, %v375, 0
      %v424 = vsel %vm395, %v376, 0
      %v427 = vsel %vm395, %v377, 0
      %v430 = vsel %vm395, %v378, 0
      %v433 = vsel %vm395, %v379, 0
      %v436 = vsel %vm395, %v380, 0
      %v439 = vsel %vm395, %v381, 0
      %v442 = vsel %vm395, %v382, 0
      %444 = vmatprep.subr.bf16.mxu0 0
      %445 = vmatpush1.bf16.msra.mxu0 %v391
      %446 = vmatprep.subr.bf16.mxu0 0
      %447 = vmatpush1.bf16.msra.mxu0 %v392
      %448 = vmatprep.subr.bf16.mxu0 0
      %449 = vmatpush1.bf16.msra.mxu0 0
      %450 = vmatprep.subr.bf16.mxu0 0
      %451 = vmatpush1.bf16.msra.mxu0 0
      %452 = vmatprep.subr.bf16.mxu0 0
      %453 = vmatpush1.bf16.msra.mxu0 0
      %454 = vmatprep.subr.bf16.mxu0 0
      %455 = vmatpush1.bf16.msra.mxu0 0
      %456 = vmatprep.subr.bf16.mxu0 0
      %457 = vmatpush1.bf16.msra.mxu0 0
      %458 = vmatprep.subr.bf16.mxu0 0
      %459 = vmatpush1.bf16.msra.mxu0 0
      %460 = vmatprep.subr.bf16.mxu0 0
      %461 = vmatpush1.bf16.msra.mxu0 0
      %462 = vmatprep.subr.bf16.mxu0 0
      %463 = vmatpush1.bf16.msra.mxu0 0
      %464 = vmatprep.subr.bf16.mxu0 0
      %465 = vmatpush1.bf16.msra.mxu0 0
      %466 = vmatprep.subr.bf16.mxu0 0
      %467 = vmatpush1.bf16.msra.mxu0 0
      %468 = vmatprep.subr.bf16.mxu0 0
      %469 = vmatpush1.bf16.msra.mxu0 0
      %470 = vmatprep.subr.bf16.mxu0 0
      %471 = vmatpush1.bf16.msra.mxu0 0
      %472 = vmatprep.subr.bf16.mxu0 0
      %473 = vmatpush1.bf16.msra.mxu0 0
      %474 = vmatprep.subr.bf16.mxu0 0
      %475 = vmatpush1.bf16.msra.mxu0 0
      %476 = vmatprep.mubr.bf16.mxu0 0
      %477 = vmatmul.mubr.bf16.gmra.mrb[0].mxu0 %v397
      %v478 = vpop.f32.mrb[0].mxu0
      %v479 = vadd.f32 0.0, %v478
      %v480 = vpop.f32.mrb[0].mxu0
      %v481 = vpop.f32.mrb[0].mxu0
      %v482 = vadd.f32 0.0, %v481
      %v483 = vpop.f32.mrb[0].mxu0
      %484 = vmatprep.mubr.bf16.mxu0 0
      %485 = vmatmul.mubr.bf16.gmra.mrb[0].mxu0 %v400
      %v486 = vpop.f32.mrb[0].mxu0
      %v487 = vadd.f32 0.0, %v486
      %v488 = vpop.f32.mrb[0].mxu0
      %v489 = vpop.f32.mrb[0].mxu0
      %v490 = vadd.f32 0.0, %v489
      %v491 = vpop.f32.mrb[0].mxu0
      %492 = vmatprep.mubr.bf16.mxu0 0
      %493 = vmatmul.mubr.bf16.gmra.mrb[0].mxu0 %v403
      %v494 = vpop.f32.mrb[0].mxu0
      %v495 = vadd.f32 0.0, %v494
      %v496 = vpop.f32.mrb[0].mxu0
      %v497 = vpop.f32.mrb[0].mxu0
      %v498 = vadd.f32 0.0, %v497
      %v499 = vpop.f32.mrb[0].mxu0
      %500 = vmatprep.mubr.bf16.mxu0 0
      %501 = vmatmul.mubr.bf16.gmra.mrb[0].mxu0 %v406
      %v502 = vpop.f32.mrb[0].mxu0
      %v503 = vadd.f32 0.0, %v502
      %v504 = vpop.f32.mrb[0].mxu0
      %v505 = vpop.f32.mrb[0].mxu0
      %v506 = vadd.f32 0.0, %v505
      %v507 = vpop.f32.mrb[0].mxu0
      %508 = vmatprep.mubr.bf16.mxu0 0
      %509 = vmatmul.mubr.bf16.gmra.mrb[0].mxu0 %v409
      %v510 = vpop.f32.mrb[0].mxu0
      %v511 = vadd.f32 0.0, %v510
      %v512 = vpop.f32.mrb[0].mxu0
      %v513 = vpop.f32.mrb[0].mxu0
      %v514 = vadd.f32 0.0, %v513
      %v515 = vpop.f32.mrb[0].mxu0
      %516 = vmatprep.mubr.bf16.mxu0 0
      %517 = vmatmul.mubr.bf16.gmra.mrb[0].mxu0 %v412
      %v518 = vpop.f32.mrb[0].mxu0
      %v519 = vadd.f32 0.0, %v518
      %v520 = vpop.f32.mrb[0].mxu0
      %v521 = vpop.f32.mrb[0].mxu0
      %v522 = vadd.f32 0.0, %v521
      %v523 = vpop.f32.mrb[0].mxu0
      %524 = vmatprep.mubr.bf16.mxu0 0
      %525 = vmatmul.mubr.bf16.gmra.mrb[0].mxu0 %v415
      %v526 = vpop.f32.mrb[0].mxu0
      %v527 = vadd.f32 0.0, %v526
      %v528 = vpop.f32.mrb[0].mxu0
      %v529 = vpop.f32.mrb[0].mxu0
      %v530 = vadd.f32 0.0, %v529
      %v531 = vpop.f32.mrb[0].mxu0
      %532 = vmatprep.mubr.bf16.mxu0 0
      %533 = vmatmul.mubr.bf16.gmra.mrb[0].mxu0 %v418
      %v534 = vpop.f32.mrb[0].mxu0
      %v535 = vadd.f32 0.0, %v534
      %v536 = vpop.f32.mrb[0].mxu0
      %v537 = vpop.f32.mrb[0].mxu0
      %v538 = vadd.f32 0.0, %v537
      %v539 = vpop.f32.mrb[0].mxu0
      %540 = vmatprep.mubr.bf16.mxu0 0
      %541 = vmatmul.mubr.bf16.gmra.mrb[0].mxu0 %v421
      %v542 = vpop.f32.mrb[0].mxu0
      %v543 = vadd.f32 0.0, %v542
      %v544 = vpop.f32.mrb[0].mxu0
      %v545 = vpop.f32.mrb[0].mxu0
      %v546 = vadd.f32 0.0, %v545
      %v547 = vpop.f32.mrb[0].mxu0
      %548 = vmatprep.mubr.bf16.mxu0 0
      %549 = vmatmul.mubr.bf16.gmra.mrb[0].mxu0 %v424
      %v550 = vpop.f32.mrb[0].mxu0
      %v551 = vadd.f32 0.0, %v550
      %v552 = vpop.f32.mrb[0].mxu0
      %v553 = vpop.f32.mrb[0].mxu0
      %v554 = vadd.f32 0.0, %v553
      %v555 = vpop.f32.mrb[0].mxu0
      %556 = vmatprep.mubr.bf16.mxu0 0
      %557 = vmatmul.mubr.bf16.gmra.mrb[0].mxu0 %v427
      %v558 = vpop.f32.mrb[0].mxu0
      %v559 = vadd.f32 0.0, %v558
      %v560 = vpop.f32.mrb[0].mxu0
      %v561 = vpop.f32.mrb[0].mxu0
      %v562 = vadd.f32 0.0, %v561
      %v563 = vpop.f32.mrb[0].mxu0
      %564 = vmatprep.mubr.bf16.mxu0 0
      %565 = vmatmul.mubr.bf16.gmra.mrb[0].mxu0 %v430
      %v566 = vpop.f32.mrb[0].mxu0
      %v567 = vadd.f32 0.0, %v566
      %v568 = vpop.f32.mrb[0].mxu0
      %v569 = vpop.f32.mrb[0].mxu0
      %v570 = vadd.f32 0.0, %v569
      %v571 = vpop.f32.mrb[0].mxu0
      %572 = vmatprep.mubr.bf16.mxu0 0
      %573 = vmatmul.mubr.bf16.gmra.mrb[0].mxu0 %v433
      %v574 = vpop.f32.mrb[0].mxu0
      %v575 = vadd.f32 0.0, %v574
      %v576 = vpop.f32.mrb[0].mxu0
      %v577 = vpop.f32.mrb[0].mxu0
      %v578 = vadd.f32 0.0, %v577
      %v579 = vpop.f32.mrb[0].mxu0
      %580 = vmatprep.mubr.bf16.mxu0 0
      %581 = vmatmul.mubr.bf16.gmra.mrb[0].mxu0 %v436
      %v582 = vpop.f32.mrb[0].mxu0
      %v583 = vadd.f32 0.0, %v582
      %v584 = vpop.f32.mrb[0].mxu0
      %v585 = vpop.f32.mrb[0].mxu0
      %v586 = vadd.f32 0.0, %v585
      %v587 = vpop.f32.mrb[0].mxu0
      %588 = vmatprep.mubr.bf16.mxu0 0
      %589 = vmatmul.mubr.bf16.gmra.mrb[0].mxu0 %v439
      %v590 = vpop.f32.mrb[0].mxu0
      %v591 = vadd.f32 0.0, %v590
      %v592 = vpop.f32.mrb[0].mxu0
      %v593 = vpop.f32.mrb[0].mxu0
      %v594 = vadd.f32 0.0, %v593
      %v595 = vpop.f32.mrb[0].mxu0
      %596 = vmatprep.mubr.bf16.mxu0 0
      %597 = vmatmul.mubr.bf16.gmra.mrb[0].mxu0 %v442
      %v598 = vpop.f32.mrb[0].mxu0
      %v599 = vadd.f32 0.0, %v598
      %v600 = vpop.f32.mrb[0].mxu0
      %v601 = vpop.f32.mrb[0].mxu0
      %v602 = vadd.f32 0.0, %v601
      %v603 = vpop.f32.mrb[0].mxu0
      %604 = vdwg.mxu0
      %v605 = vld [vmem:[%s253] sm:$0x1]
      %v607 = vlaneseq
      %v608 = vshrl.u32 %v607, 7
      %v609 = vsub.s32 0, %v608
      %v610 = vrot.slane %v605, %v609
      %v612 = vmul.f32 %v479, %v610
      %v613 = vmul.f32 %v482, %v610
      %v614 = vmul.f32 %v487, %v610
      %v615 = vmul.f32 %v490, %v610
      %v616 = vmul.f32 %v495, %v610
      %v617 = vmul.f32 %v498, %v610
      %v618 = vmul.f32 %v503, %v610
      %v619 = vmul.f32 %v506, %v610
      %v620 = vmul.f32 %v511, %v610
      %v621 = vmul.f32 %v514, %v610
      %v622 = vmul.f32 %v519, %v610
      %v623 = vmul.f32 %v522, %v610
      %v624 = vmul.f32 %v527, %v610
      %v625 = vmul.f32 %v530, %v610
      %v626 = vmul.f32 %v535, %v610
      %v627 = vmul.f32 %v538, %v610
      %v628 = vmul.f32 %v543, %v610
      %v629 = vmul.f32 %v546, %v610
      %v630 = vmul.f32 %v551, %v610
      %v631 = vmul.f32 %v554, %v610
      %v632 = vmul.f32 %v559, %v610
      %v633 = vmul.f32 %v562, %v610
      %v634 = vmul.f32 %v567, %v610
      %v635 = vmul.f32 %v570, %v610
      %v636 = vmul.f32 %v575, %v610
      %v637 = vmul.f32 %v578, %v610
      %v638 = vmul.f32 %v583, %v610
      %v639 = vmul.f32 %v586, %v610
      %v640 = vmul.f32 %v591, %v610
      %v641 = vmul.f32 %v594, %v610
      %v642 = vmul.f32 %v599, %v610
      %v643 = vmul.f32 %v602, %v610
      %v644 = vld [vmem:[%s256] sm:$0x1]
      %v646 = vlaneseq
      %v647 = vshrl.u32 %v646, 7
      %v648 = vsub.s32 0, %v647
      %v649 = vrot.slane %v644, %v648
      %v651 = vadd.f32 %v612, %v649
      %v652 = vadd.f32 %v613, %v649
      %v653 = vadd.f32 %v614, %v649
      %v654 = vadd.f32 %v615, %v649
      %v655 = vadd.f32 %v616, %v649
      %v656 = vadd.f32 %v617, %v649
      %v657 = vadd.f32 %v618, %v649
      %v658 = vadd.f32 %v619, %v649
      %v659 = vadd.f32 %v620, %v649
      %v660 = vadd.f32 %v621, %v649
      %v661 = vadd.f32 %v622, %v649
      %v662 = vadd.f32 %v623, %v649
      %v663 = vadd.f32 %v624, %v649
      %v664 = vadd.f32 %v625, %v649
      %v665 = vadd.f32 %v626, %v649
      %v666 = vadd.f32 %v627, %v649
      %v667 = vadd.f32 %v628, %v649
      %v668 = vadd.f32 %v629, %v649
      %v669 = vadd.f32 %v630, %v649
      %v670 = vadd.f32 %v631, %v649
      %v671 = vadd.f32 %v632, %v649
      %v672 = vadd.f32 %v633, %v649
      %v673 = vadd.f32 %v634, %v649
      %v674 = vadd.f32 %v635, %v649
      %v675 = vadd.f32 %v636, %v649
      %v676 = vadd.f32 %v637, %v649
      %v677 = vadd.f32 %v638, %v649
      %v678 = vadd.f32 %v639, %v649
      %v679 = vadd.f32 %v640, %v649
      %v680 = vadd.f32 %v641, %v649
      %v681 = vadd.f32 %v642, %v649
      %v682 = vadd.f32 %v643, %v649
      %vm683 = vcmp.ge.f32.partialorder %v651, 0.0
      %vm684 = vcmp.ge.f32.partialorder %v652, 0.0
      %vm685 = vcmp.ge.f32.partialorder %v653, 0.0
      %vm686 = vcmp.ge.f32.partialorder %v654, 0.0
      %vm687 = vcmp.ge.f32.partialorder %v655, 0.0
      %vm688 = vcmp.ge.f32.partialorder %v656, 0.0
      %vm689 = vcmp.ge.f32.partialorder %v657, 0.0
      %vm690 = vcmp.ge.f32.partialorder %v658, 0.0
      %vm691 = vcmp.ge.f32.partialorder %v659, 0.0
      %vm692 = vcmp.ge.f32.partialorder %v660, 0.0
      %vm693 = vcmp.ge.f32.partialorder %v661, 0.0
      %vm694 = vcmp.ge.f32.partialorder %v662, 0.0
      %vm695 = vcmp.ge.f32.partialorder %v663, 0.0
      %vm696 = vcmp.ge.f32.partialorder %v664, 0.0
      %vm697 = vcmp.ge.f32.partialorder %v665, 0.0
      %vm698 = vcmp.ge.f32.partialorder %v666, 0.0
      %vm699 = vcmp.ge.f32.partialorder %v667, 0.0
      %vm700 = vcmp.ge.f32.partialorder %v668, 0.0
      %vm701 = vcmp.ge.f32.partialorder %v669, 0.0
      %vm702 = vcmp.ge.f32.partialorder %v670, 0.0
      %vm703 = vcmp.ge.f32.partialorder %v671, 0.0
      %vm704 = vcmp.ge.f32.partialorder %v672, 0.0
      %vm705 = vcmp.ge.f32.partialorder %v673, 0.0
      %vm706 = vcmp.ge.f32.partialorder %v674, 0.0
      %vm707 = vcmp.ge.f32.partialorder %v675, 0.0
      %vm708 = vcmp.ge.f32.partialorder %v676, 0.0
      %vm709 = vcmp.ge.f32.partialorder %v677, 0.0
      %vm710 = vcmp.ge.f32.partialorder %v678, 0.0
      %vm711 = vcmp.ge.f32.partialorder %v679, 0.0
      %vm712 = vcmp.ge.f32.partialorder %v680, 0.0
      %vm713 = vcmp.ge.f32.partialorder %v681, 0.0
      %vm714 = vcmp.ge.f32.partialorder %v682, 0.0
      %v715 = vmul.f32 %v651, 0.01
      %v716 = vmul.f32 %v652, 0.01
      %v717 = vmul.f32 %v653, 0.01
      %v718 = vmul.f32 %v654, 0.01
      %v719 = vmul.f32 %v655, 0.01
      %v720 = vmul.f32 %v656, 0.01
      %v721 = vmul.f32 %v657, 0.01
      %v722 = vmul.f32 %v658, 0.01
      %v723 = vmul.f32 %v659, 0.01
      %v724 = vmul.f32 %v660, 0.01
      %v725 = vmul.f32 %v661, 0.01
      %v726 = vmul.f32 %v662, 0.01
      %v727 = vmul.f32 %v663, 0.01
      %v728 = vmul.f32 %v664, 0.01
      %v729 = vmul.f32 %v665, 0.01
      %v730 = vmul.f32 %v666, 0.01
      %v731 = vmul.f32 %v667, 0.01
      %v732 = vmul.f32 %v668, 0.01
      %v733 = vmul.f32 %v669, 0.01
      %v734 = vmul.f32 %v670, 0.01
      %v735 = vmul.f32 %v671, 0.01
      %v736 = vmul.f32 %v672, 0.01
      %v737 = vmul.f32 %v673, 0.01
      %v738 = vmul.f32 %v674, 0.01
      %v739 = vmul.f32 %v675, 0.01
      %v740 = vmul.f32 %v676, 0.01
      %v741 = vmul.f32 %v677, 0.01
      %v742 = vmul.f32 %v678, 0.01
      %v743 = vmul.f32 %v679, 0.01
      %v744 = vmul.f32 %v680, 0.01
      %v745 = vmul.f32 %v681, 0.01
      %v746 = vmul.f32 %v682, 0.01
      %v747 = vsel %vm683, %v651, %v715
      %v748 = vsel %vm684, %v652, %v716
      %v749 = vsel %vm685, %v653, %v717
      %v750 = vsel %vm686, %v654, %v718
      %v751 = vsel %vm687, %v655, %v719
      %v752 = vsel %vm688, %v656, %v720
      %v753 = vsel %vm689, %v657, %v721
      %v754 = vsel %vm690, %v658, %v722
      %v755 = vsel %vm691, %v659, %v723
      %v756 = vsel %vm692, %v660, %v724
      %v757 = vsel %vm693, %v661, %v725
      %v758 = vsel %vm694, %v662, %v726
      %v759 = vsel %vm695, %v663, %v727
      %v760 = vsel %vm696, %v664, %v728
      %v761 = vsel %vm697, %v665, %v729
      %v762 = vsel %vm698, %v666, %v730
      %v763 = vsel %vm699, %v667, %v731
      %v764 = vsel %vm700, %v668, %v732
      %v765 = vsel %vm701, %v669, %v733
      %v766 = vsel %vm702, %v670, %v734
      %v767 = vsel %vm703, %v671, %v735
      %v768 = vsel %vm704, %v672, %v736
      %v769 = vsel %vm705, %v673, %v737
      %v770 = vsel %vm706, %v674, %v738
      %v771 = vsel %vm707, %v675, %v739
      %v772 = vsel %vm708, %v676, %v740
      %v773 = vsel %vm709, %v677, %v741
      %v774 = vsel %vm710, %v678, %v742
      %v775 = vsel %vm711, %v679, %v743
      %v776 = vsel %vm712, %v680, %v744
      %v777 = vsel %vm713, %v681, %v745
      %v778 = vsel %vm714, %v682, %v746
      %v779 = vpack.c.bf16 %v748, %v747
      %v780 = vpack.c.bf16 %v750, %v749
      %v781 = vpack.c.bf16 %v752, %v751
      %v782 = vpack.c.bf16 %v754, %v753
      %v783 = vpack.c.bf16 %v756, %v755
      %v784 = vpack.c.bf16 %v758, %v757
      %v785 = vpack.c.bf16 %v760, %v759
      %v786 = vpack.c.bf16 %v762, %v761
      %v787 = vpack.c.bf16 %v764, %v763
      %v788 = vpack.c.bf16 %v766, %v765
      %v789 = vpack.c.bf16 %v768, %v767
      %v790 = vpack.c.bf16 %v770, %v769
      %v791 = vpack.c.bf16 %v772, %v771
      %v792 = vpack.c.bf16 %v774, %v773
      %v793 = vpack.c.bf16 %v776, %v775
      %v794 = vpack.c.bf16 %v778, %v777
      %v811 = vunpack.c.l.b16 %v779
      %v812 = vunpack.c.h.b16 %v779
      %v813 = vunpack.c.l.b16 %v780
      %v814 = vunpack.c.h.b16 %v780
      %v815 = vunpack.c.l.b16 %v781
      %v816 = vunpack.c.h.b16 %v781
      %v817 = vunpack.c.l.b16 %v782
      %v818 = vunpack.c.h.b16 %v782
      %v819 = vunpack.c.l.b16 %v783
      %v820 = vunpack.c.h.b16 %v783
      %v821 = vunpack.c.l.b16 %v784
      %v822 = vunpack.c.h.b16 %v784
      %v823 = vunpack.c.l.b16 %v785
      %v824 = vunpack.c.h.b16 %v785
      %v825 = vunpack.c.l.b16 %v786
      %v826 = vunpack.c.h.b16 %v786
      %v827 = vunpack.c.l.b16 %v787
      %v828 = vunpack.c.h.b16 %v787
      %v829 = vunpack.c.l.b16 %v788
      %v830 = vunpack.c.h.b16 %v788
      %v831 = vunpack.c.l.b16 %v789
      %v832 = vunpack.c.h.b16 %v789
      %v833 = vunpack.c.l.b16 %v790
      %v834 = vunpack.c.h.b16 %v790
      %v835 = vunpack.c.l.b16 %v791
      %v836 = vunpack.c.h.b16 %v791
      %v837 = vunpack.c.l.b16 %v792
      %v838 = vunpack.c.h.b16 %v792
      %v839 = vunpack.c.l.b16 %v793
      %v840 = vunpack.c.h.b16 %v793
      %v841 = vunpack.c.l.b16 %v794
      %v842 = vunpack.c.h.b16 %v794
      %v843 = vpack.c.b16 %v811, %v811
      %v844 = vpack.c.b16 %v812, %v812
      %v845 = vpack.c.b16 %v813, %v813
      %v846 = vpack.c.b16 %v814, %v814
      %v847 = vpack.c.b16 %v815, %v815
      %v848 = vpack.c.b16 %v816, %v816
      %v849 = vpack.c.b16 %v817, %v817
      %v850 = vpack.c.b16 %v818, %v818
      %v851 = vpack.c.b16 %v819, %v819
      %v852 = vpack.c.b16 %v820, %v820
      %v853 = vpack.c.b16 %v821, %v821
      %v854 = vpack.c.b16 %v822, %v822
      %v855 = vpack.c.b16 %v823, %v823
      %v856 = vpack.c.b16 %v824, %v824
      %v857 = vpack.c.b16 %v825, %v825
      %v858 = vpack.c.b16 %v826, %v826
      %v859 = vpack.c.b16 %v827, %v827
      %v860 = vpack.c.b16 %v828, %v828
      %v861 = vpack.c.b16 %v829, %v829
      %v862 = vpack.c.b16 %v830, %v830
      %v863 = vpack.c.b16 %v831, %v831
      %v864 = vpack.c.b16 %v832, %v832
      %v865 = vpack.c.b16 %v833, %v833
      %v866 = vpack.c.b16 %v834, %v834
      %v867 = vpack.c.b16 %v835, %v835
      %v868 = vpack.c.b16 %v836, %v836
      %v869 = vpack.c.b16 %v837, %v837
      %v870 = vpack.c.b16 %v838, %v838
      %v871 = vpack.c.b16 %v839, %v839
      %v872 = vpack.c.b16 %v840, %v840
      %v873 = vpack.c.b16 %v841, %v841
      %v874 = vpack.c.b16 %v842, %v842
      %907 = vst [vmem:[%s264] sm:$0xf] %v843
      %908 = vst [vmem:[%s264 + $0x4] sm:$0xf] %v844
      %909 = vst [vmem:[%s264 + $0x8] sm:$0xf] %v845
      %910 = vst [vmem:[%s264 + $0xc] sm:$0xf] %v846
      %911 = vst [vmem:[%s264 + $0x10] sm:$0xf] %v847
      %912 = vst [vmem:[%s264 + $0x14] sm:$0xf] %v848
      %913 = vst [vmem:[%s264 + $0x18] sm:$0xf] %v849
      %914 = vst [vmem:[%s264 + $0x1c] sm:$0xf] %v850
      %915 = vst [vmem:[%s264 + $0x20] sm:$0xf] %v851
      %916 = vst [vmem:[%s264 + $0x24] sm:$0xf] %v852
      %917 = vst [vmem:[%s264 + $0x28] sm:$0xf] %v853
      %918 = vst [vmem:[%s264 + $0x2c] sm:$0xf] %v854
      %919 = vst [vmem:[%s264 + $0x30] sm:$0xf] %v855
      %920 = vst [vmem:[%s264 + $0x34] sm:$0xf] %v856
      %921 = vst [vmem:[%s264 + $0x38] sm:$0xf] %v857
      %922 = vst [vmem:[%s264 + $0x3c] sm:$0xf] %v858
      %923 = vst [vmem:[%s264 + $0x40] sm:$0xf] %v859
      %924 = vst [vmem:[%s264 + $0x44] sm:$0xf] %v860
      %925 = vst [vmem:[%s264 + $0x48] sm:$0xf] %v861
      %926 = vst [vmem:[%s264 + $0x4c] sm:$0xf] %v862
      %927 = vst [vmem:[%s264 + $0x50] sm:$0xf] %v863
      %928 = vst [vmem:[%s264 + $0x54] sm:$0xf] %v864
      %929 = vst [vmem:[%s264 + $0x58] sm:$0xf] %v865
      %930 = vst [vmem:[%s264 + $0x5c] sm:$0xf] %v866
      %931 = vst [vmem:[%s264 + $0x60] sm:$0xf] %v867
      %932 = vst [vmem:[%s264 + $0x64] sm:$0xf] %v868
      %933 = vst [vmem:[%s264 + $0x68] sm:$0xf] %v869
      %934 = vst [vmem:[%s264 + $0x6c] sm:$0xf] %v870
      %935 = vst [vmem:[%s264 + $0x70] sm:$0xf] %v871
      %936 = vst [vmem:[%s264 + $0x74] sm:$0xf] %v872
      %937 = vst [vmem:[%s264 + $0x78] sm:$0xf] %v873
      %938 = vst [vmem:[%s264 + $0x7c] sm:$0xf] %v874
      %s939 = smul.u32 32, %s19
      %p940 = scmp.lt.s32.totalorder %s939, 127
      %s941 = scalar_select %p940, %s939, 127
      %p942 = scmp.lt.s32.totalorder %s20, 0
      %s943 = scalar_select %p942, %s20, 0
      %s944 = sadd.s32 %s943, %s941
      %s945 = smul.addr %s944, 4
      %s946 = scalar_lea.vmem %s4, %s945
      // Predicated region
      $region37: #{upblock_bn_forward.1} parent=35 // pred_check
        %p947 = pneg %p151
      $region38: #{upblock_bn_forward.1} parent=35 // pred_check_branch
        %949 = sbr.rel (%p947) target = $region40
      $region39: #{upblock_bn_forward.1} parent=35 // pred_region
        %s950 = smul.u32 32, %s19
      $region40: #{upblock_bn_forward.1} parent=35 // pred_fallthru
        _
    $region36: #{upblock_bn_forward.1} parent=5 // pred_fallthru
      _
    %p951 = scmp.le.s32.totalorder 2, %s10
    // Predicated region
    $region41: #{upblock_bn_forward.1} parent=5 // pred_check
      %p952 = pneg %p951
    $region42: #{upblock_bn_forward.1} parent=5 // pred_check_branch
      %954 = sbr.rel (%p952) target = $region44
    $region43: #{upblock_bn_forward.1} parent=5 // pred_region
      %s955 = ssub.s32 %s10, 2
      // Predicated region
      $region45: #{upblock_bn_forward.1} parent=43 // pred_check
        %p956 = pneg %p157
      $region46: #{upblock_bn_forward.1} parent=43 // pred_check_branch
        %958 = sbr.rel (%p956) target = $region48
      $region47: #{upblock_bn_forward.1} parent=43 // pred_region
        %s959 = smul.u32 32, %s21
        %p960 = scmp.lt.s32.totalorder %s959, 127
        %s961 = scalar_select %p960, %s959, 127
        %p962 = scmp.lt.s32.totalorder %s22, 0
        %s963 = scalar_select %p962, %s22, 0
        %s964 = sadd.s32 %s963, %s961
        %s965 = smul.addr %s964, 4
        %s966 = scalar_lea.vmem %s4, %s965
      $region48: #{upblock_bn_forward.1} parent=43 // pred_fallthru
        _
    $region44: #{upblock_bn_forward.1} parent=5 // pred_fallthru
      _
  $region6: #{upblock_bn_forward.1} parent=0 // loop_footer
    %s14 = sadd.s32 1, %s10
  $region7: #{upblock_bn_forward.1} parent=0 // loop_footer_branch
    %9 = sbr.rel target = $region3
  $region8: #{upblock_bn_forward.1} parent=0 // loop_exit
    _

</llo_original>
